<compile_context>
chip_gen: v7x
topology: tpu7x:2x2x1
jax: 0.10.0
libtpu: 0.0.40
codegen_flags: <defaults>
</compile_context>

<pallas_src>
import functools
import numpy as np

import jax
import jax.numpy as jnp
from jax.experimental import pallas as pl
from jax.experimental.pallas import tpu as pltpu


# ---------------------------------------------------------------------------
# Bicubic interpolation weights (torch F.interpolate, mode='bicubic',
# align_corners=False, a=-0.75), precomputed on host (glue, not hot path).
# Separable: out[H,W] = Wh @ in[hf,wf] @ Ww^T.
# ---------------------------------------------------------------------------
def _cubic_kernel(x, a=-0.75):
    x = np.abs(x)
    x2, x3 = x * x, x * x * x
    return np.where(
        x <= 1.0,
        (a + 2.0) * x3 - (a + 3.0) * x2 + 1.0,
        np.where(x < 2.0, a * x3 - 5.0 * a * x2 + 8.0 * a * x - 4.0 * a, 0.0),
    )


def bicubic_matrix(out_size, in_size):
    """W[o, i] such that out = W @ in (1-D bicubic resize, align_corners=False)."""
    scale = in_size / out_size
    W = np.zeros((out_size, in_size), dtype=np.float32)
    for o in range(out_size):
        src = (o + 0.5) * scale - 0.5
        i0 = int(np.floor(src))
        frac = src - i0
        for k in range(-1, 3):
            idx = min(max(i0 + k, 0), in_size - 1)
            W[o, idx] += float(_cubic_kernel(k - frac))
    return W


# ---------------------------------------------------------------------------
# VMEM-budget-driven tiling (perf review: size tile_h from bytes, not just
# divisibility, so realistic SAM sizes compile on v5e/v6e/v7x alike).
# ---------------------------------------------------------------------------
def _vmem_budget_bytes():
    try:
        info = pltpu.get_tpu_info()
        cap = getattr(info, "vmem_capacity_bytes", None) or getattr(
            info, "vmem_size_bytes", None)
        if cap:
            return int(min(int(cap) * 3 // 4, 96 * 1024 * 1024))
    except Exception:
        pass
    # Safe everywhere (v7x has 64 MiB physical VMEM per TensorCore).
    return 48 * 1024 * 1024


def _pick_tile_h(H, *, E, N, hf, wf, W, budget, sub=16):
    """Largest multiple-of-16 divisor of H whose working set fits `budget`."""
    # resident / double-buffered fixed blocks of the upsample kernel
    fixed = (2 * hf * E * wf * 2        # feat2 (bf16), double-buffered
             + 2 * hf * N * wf * 4      # ql2  (f32)
             + 2 * wf * W * 4           # wwT  (f32)
             + 2 * 1024 * 1024)         # slack / compiler scratch
    # bytes that scale with tile_h (output block, wh block, value intermediates)
    per_h = (E * (2 * W * 2             # featup out block (bf16, double-buffered)
                  + wf * 12             # stage-1 f32 result + reorder + bf16 copy
                  + W * 6)              # stage-2 f32 result + bf16 cast
             + N * (wf * 12 + W * 8)    # logits-path intermediates (f32)
             + 2 * hf * 4)              # wh block (f32, double-buffered)
    avail = budget - fixed
    t = max(avail // per_h, sub)
    t = min(int(t), H)
    t -= t % sub
    while t >= sub:
        if H % t == 0:
            return int(t)
        t -= sub
    return int(H)  # fall back to an untiled H axis (block == full dim is legal)


# ---------------------------------------------------------------------------
# Kernel 1 (grid = (B, hf), both "parallel"):
#   synthetic SAM patch-embed + object-query logits, one spatial row of the
#   low-res grid per step.  No in-kernel reshapes/transposes; the hf-major
#   output layout is exactly what the upsample kernel's wide matmul wants.
# ---------------------------------------------------------------------------
def _encode_kernel(x_ref, wT_ref, b_ref, q_ref, emb_ref, ql_ref):
    x = x_ref[0, 0]                                                    # (K, wf) bf16
    emb = jnp.dot(wT_ref[...], x,
                  preferred_element_type=jnp.float32) + b_ref[...]    # (E, wf) f32
    ql = jnp.dot(q_ref[...], emb, preferred_element_type=jnp.float32)  # (N, wf) f32
    emb_ref[0, 0] = emb.astype(jnp.bfloat16)
    ql_ref[0, 0] = ql


def patch_embed(xR, wT_bf16, bias, queries):
    B, hf, K, wf = xR.shape
    E = wT_bf16.shape[0]
    N = queries.shape[0]
    return pl.pallas_call(
        _encode_kernel,
        out_shape=(
            jax.ShapeDtypeStruct((B, hf, E, wf), jnp.bfloat16),  # features (hf-major)
            jax.ShapeDtypeStruct((B, hf, N, wf), jnp.float32),   # low-res object logits
        ),
        grid=(B, hf),
        in_specs=[
            pl.BlockSpec((1, 1, K, wf), lambda b, h: (b, h, 0, 0)),
            pl.BlockSpec((E, K), lambda b, h: (0, 0)),
            pl.BlockSpec((E, 1), lambda b, h: (0, 0)),
            pl.BlockSpec((N, E), lambda b, h: (0, 0)),
        ],
        out_specs=(
            pl.BlockSpec((1, 1, E, wf), lambda b, h: (b, h, 0, 0)),
            pl.BlockSpec((1, 1, N, wf), lambda b, h: (b, h, 0, 0)),
        ),
        compiler_params=pltpu.CompilerParams(
            dimension_semantics=("parallel", "parallel")),
    )(xR, wT_bf16, bias, queries)


# ---------------------------------------------------------------------------
# Shared separable-bicubic tile upsample (used identically by both sweeps so
# the mask/area math is bit-identical between them).
#   maps2 : (hf, n*wf)   wh : (tile_h, hf)   wwT : (wf, W)   ->  (n, tile_h, W)
# Two wide matmuls; the reorder happens on the small wf-sized intermediate.
# ---------------------------------------------------------------------------
def _separable_upsample(maps2, wh, wwT, *, n, wf, tile_h, W, compute_dtype):
    u = jnp.dot(wh.astype(compute_dtype), maps2.astype(compute_dtype),
                preferred_element_type=jnp.float32)                  # (tile_h, n*wf)
    u = u.reshape(tile_h, n, wf)
    u = jnp.transpose(u, (1, 0, 2))                                  # (n, tile_h, wf)
    u = u.reshape(n * tile_h, wf).astype(compute_dtype)
    u = jnp.dot(u, wwT.astype(compute_dtype),
                preferred_element_type=jnp.float32)                  # (n*tile_h, W)
    return u.reshape(n, tile_h, W)


# ---------------------------------------------------------------------------
# Kernel 2 (grid = (B, H/TILE_H), both "parallel" -> v7x megacore splits H):
#   bicubic-upsample the E feature channels for this H tile (bf16 operands,
#   f32 accumulate, bf16 HBM write), upsample the N object-logit maps (f32),
#   threshold > 0 and emit per-tile partial mask areas (global area sum done
#   in XLA, so there is no resident accumulator and no "arbitrary" axis).
# ---------------------------------------------------------------------------
def _upsample_kernel(feat2_ref, ql2_ref, wh_ref, wwT_ref, featup_ref, parea_ref,
                     *, E, N, wf, tile_h, W):
    wh = wh_ref[...]                                                 # (tile_h, hf) f32
    wwT = wwT_ref[...]                                               # (wf, W) f32

    up = _separable_upsample(feat2_ref[0], wh, wwT, n=E, wf=wf,
                             tile_h=tile_h, W=W, compute_dtype=jnp.bfloat16)
    featup_ref[0] = up.astype(jnp.bfloat16)                          # (E, tile_h, W)

    logits = _separable_upsample(ql2_ref[0], wh, wwT, n=N, wf=wf,
                                 tile_h=tile_h, W=W, compute_dtype=jnp.float32)
    mask = (logits > 0.0).astype(jnp.float32)                        # (N, tile_h, W)
    area = jnp.sum(jnp.sum(mask, axis=2), axis=1, keepdims=True)     # (N, 1)
    parea_ref[...] = area[None, None]                                # (1, 1, N, 1)


def upsample_features(feat2, ql2, wh, wwT, *, E, N, tile_h, vmem_limit):
    B, hf, _ = feat2.shape
    H = wh.shape[0]
    wf, W = wwT.shape
    HT = H // tile_h
    kernel = functools.partial(_upsample_kernel, E=E, N=N, wf=wf,
                               tile_h=tile_h, W=W)
    return pl.pallas_call(
        kernel,
        out_shape=(
            jax.ShapeDtypeStruct((B, E, H, W), jnp.bfloat16),   # upsampled SAM features
            jax.ShapeDtypeStruct((B, HT, N, 1), jnp.float32),   # per-tile partial areas
        ),
        grid=(B, HT),
        in_specs=[
            pl.BlockSpec((1, hf, E * wf), lambda b, t: (b, 0, 0)),
            pl.BlockSpec((1, hf, N * wf), lambda b, t: (b, 0, 0)),
            pl.BlockSpec((tile_h, hf), lambda b, t: (t, 0)),
            pl.BlockSpec((wf, W), lambda b, t: (0, 0)),
        ],
        out_specs=(
            pl.BlockSpec((1, E, tile_h, W), lambda b, t: (b, 0, t, 0)),
            pl.BlockSpec((1, 1, N, 1), lambda b, t: (b, t, 0, 0)),
        ),
        compiler_params=pltpu.CompilerParams(
            dimension_semantics=("parallel", "parallel"),
            vmem_limit_bytes=vmem_limit),
    )(feat2, ql2, wh, wwT)


# ---------------------------------------------------------------------------
# Kernel 3 (grid = (B, H/TILE_H), both "parallel"):
#   recompute the N upsampled logit maps for this tile (cheap, N ~ 4, same f32
#   math as kernel 2), apply the global filter_mask(th) `keep` decision and
#   write static = 1 - union(kept masks).  If nothing is kept, static == 1
#   everywhere (torch.ones path).  Output stays f32 to match torch dtype; it is
#   only H*W*4 bytes per image, negligible next to the feature write-back.
# ---------------------------------------------------------------------------
def _static_kernel(ql2_ref, keep_ref, wh_ref, wwT_ref, static_ref,
                   *, N, wf, tile_h, W):
    logits = _separable_upsample(ql2_ref[0], wh_ref[...], wwT_ref[...],
                                 n=N, wf=wf, tile_h=tile_h, W=W,
                                 compute_dtype=jnp.float32)
    mask = (logits > 0.0).astype(jnp.float32)                        # (N, tile_h, W)
    keep = keep_ref[0]                                               # (N, 1)
    obj = jnp.sum(keep[:, :, None] * mask, axis=0)                   # (tile_h, W)
    static_ref[0, 0] = 1.0 - jnp.minimum(obj, 1.0)


def static_mask_from_logits(ql2, keep, wh, wwT, *, tile_h, vmem_limit):
    B, hf, _ = ql2.shape
    N = keep.shape[1]
    H = wh.shape[0]
    wf, W = wwT.shape
    HT = H // tile_h
    kernel = functools.partial(_static_kernel, N=N, wf=wf, tile_h=tile_h, W=W)
    return pl.pallas_call(
        kernel,
        out_shape=jax.ShapeDtypeStruct((B, 1, H, W), jnp.float32),
        grid=(B, HT),
        in_specs=[
            pl.BlockSpec((1, hf, N * wf), lambda b, t: (b, 0, 0)),
            pl.BlockSpec((1, N, 1), lambda b, t: (b, 0, 0)),
            pl.BlockSpec((tile_h, hf), lambda b, t: (t, 0)),
            pl.BlockSpec((wf, W), lambda b, t: (0, 0)),
        ],
        out_specs=pl.BlockSpec((1, 1, tile_h, W), lambda b, t: (b, 0, t, 0)),
        compiler_params=pltpu.CompilerParams(
            dimension_semantics=("parallel", "parallel"),
            vmem_limit_bytes=vmem_limit),
    )(ql2, keep, wh, wwT)


# ---------------------------------------------------------------------------
# Wrapper mirroring Segmentation_wrapper.forward(inference_type='image', ...)
# ---------------------------------------------------------------------------
def segmentation_forward(condition_image, params, patch=4, th=0.5, tile_h=None):
    """condition_image: (B, C, H, W) float32 in [-1, 1] (NCHW, like PyTorch).

    Returns (static_mask (B,1,H,W) f32, sam_features (B,E,H,W) bf16)."""
    B, C, H, W = condition_image.shape
    hf, wf = H // patch, W // patch
    w_embed = params["w_embed"]          # (C*p*p, E) f32
    b_embed = params["b_embed"]          # (E,)
    queries = params["queries"]          # (N, E)
    E = w_embed.shape[1]
    N = queries.shape[0]
    K = C * patch * patch

    budget = _vmem_budget_bytes()
    if tile_h is None:
        tile_h = _pick_tile_h(H, E=E, N=N, hf=hf, wf=wf, W=W, budget=budget)
    assert H % tile_h == 0

    # glue: patchify to (B, hf, K, wf); activations travel as bf16
    xR = (condition_image
          .reshape(B, C, hf, patch, wf, patch)
          .transpose(0, 2, 1, 3, 5, 4)
          .reshape(B, hf, K, wf)
          .astype(jnp.bfloat16))

    # glue: fold the (x+1)/2 normalization into the patch-embed weights
    wT = jnp.transpose(w_embed)                                    # (E, K) f32
    bias = (b_embed + 0.5 * jnp.sum(wT, axis=1)).reshape(E, 1)
    wT_bf16 = (0.5 * wT).astype(jnp.bfloat16)

    # glue: host-side separable bicubic weights (tiny, resident in VMEM)
    wh = jnp.asarray(bicubic_matrix(H, hf))                        # (H, hf)  f32
    wwT = jnp.asarray(bicubic_matrix(W, wf).T)                     # (wf, W)  f32

    # kernel 1: patch-embed + low-res object logits (hf-major layout)
    emb4, ql4 = patch_embed(xR, wT_bf16, bias, queries.astype(jnp.float32))
    feat2 = emb4.reshape(B, hf, E * wf)     # metadata-only reshapes in XLA
    ql2 = ql4.reshape(B, hf, N * wf)

    # kernel 2: feature upsample (bf16 out) + per-tile mask areas
    vmem_limit = int(budget)
    sam_features, parea = upsample_features(
        feat2, ql2, wh, wwT, E=E, N=N, tile_h=tile_h, vmem_limit=vmem_limit)

    # glue: global filter_mask(th) decision (keep object i iff area_i/(H*W) <= th)
    areas = jnp.sum(parea, axis=1)                                 # (B, N, 1)
    keep = (areas <= th * float(H * W)).astype(jnp.float32)

    # kernel 3: apply keep, union of kept masks, static mask
    static_mask = static_mask_from_logits(
        ql2, keep, wh, wwT, tile_h=tile_h, vmem_limit=vmem_limit)
    return static_mask, sam_features


# ---------------------------------------------------------------------------
# Pure-JAX reference mirroring the kernels' dtype policy (bf16 operands on the
# feature path, f32 logits path) for a numerical sanity check.
# ---------------------------------------------------------------------------
def _reference_forward(condition_image, params, patch, th):
    B, C, H, W = condition_image.shape
    hf, wf = H // patch, W // patch
    w_embed, b_embed, queries = params["w_embed"], params["b_embed"], params["queries"]
    K = C * patch * patch
    xr = (condition_image.reshape(B, C, hf, patch, wf, patch)
          .transpose(0, 2, 1, 3, 5, 4).reshape(B, hf, K, wf))
    wT = jnp.transpose(w_embed)
    bias = b_embed + 0.5 * jnp.sum(wT, axis=1)
    emb = jnp.einsum('ek,bhkw->behw', (0.5 * wT).astype(jnp.bfloat16),
                     xr.astype(jnp.bfloat16),
                     preferred_element_type=jnp.float32) + bias[None, :, None, None]
    ql = jnp.einsum('ne,behw->bnhw', queries, emb,
                    preferred_element_type=jnp.float32)
    Wh = jnp.asarray(bicubic_matrix(H, hf))
    Ww = jnp.asarray(bicubic_matrix(W, wf))
    s1 = jnp.einsum('Hh,behw->beHw', Wh.astype(jnp.bfloat16),
                    emb.astype(jnp.bfloat16), preferred_element_type=jnp.float32)
    feat_up = jnp.einsum('beHw,wW->beHW', s1.astype(jnp.bfloat16),
                         jnp.transpose(Ww).astype(jnp.bfloat16),
                         preferred_element_type=jnp.float32)
    l1 = jnp.einsum('Hh,bnhw->bnHw', Wh, ql, preferred_element_type=jnp.float32)
    log_up = jnp.einsum('bnHw,wW->bnHW', l1, jnp.transpose(Ww),
                        preferred_element_type=jnp.float32)
    mask = (log_up > 0.0).astype(jnp.float32)
    areas = mask.sum(axis=(2, 3))
    keep = (areas <= th * float(H * W)).astype(jnp.float32)
    obj = jnp.sum(keep[:, :, None, None] * mask, axis=1, keepdims=True)
    static = 1.0 - jnp.minimum(obj, 1.0)
    return static, feat_up


# ---------------------------------------------------------------------------
# TODO(synk): the pretrained SAM2 / GroundingDINO networks, the HF processor /
# PIL conversion and the 'video' propagation path have no Pallas equivalent;
# only the surrounding tensor math is kernelized around a synthetic encoder.
# ---------------------------------------------------------------------------

if __name__ == "__main__":
    key = jax.random.PRNGKey(0)
    B, C, H, W = 2, 3, 32, 32
    P = 4
    E = 32            # synthetic SAM embedding dim
    N = 4             # synthetic number of detected objects / queries
    TH = 0.6

    k1, k2, k3 = jax.random.split(key, 3)
    condition_image = jax.random.uniform(
        k1, (B, C, H, W), dtype=jnp.float32, minval=-1.0, maxval=1.0)
    params = {
        "w_embed": 0.1 * jax.random.normal(k2, (C * P * P, E), dtype=jnp.float32),
        "b_embed": jnp.zeros((E,), dtype=jnp.float32),
        "queries": 0.5 * jax.random.normal(k3, (N, E), dtype=jnp.float32),
    }

    # tile_h=16 -> 2 H tiles per image so the tiled / two-sweep path is exercised
    static_mask, sam_features = segmentation_forward(
        condition_image, params, patch=P, th=TH, tile_h=16)
    jax.block_until_ready((static_mask, sam_features))

    assert static_mask.shape == (B, 1, H, W)
    assert sam_features.shape == (B, E, H, W)
    assert sam_features.dtype == jnp.bfloat16
    assert bool(jnp.all((static_mask == 0.0) | (static_mask == 1.0)))

    # numerical sanity check against the pure-JAX reference
    static_ref, feat_ref = _reference_forward(condition_image, params, P, TH)
    feat_err = float(jnp.max(jnp.abs(sam_features.astype(jnp.float32) - feat_ref)))
    mask_dis = float(jnp.mean(jnp.abs(static_mask - static_ref)))
    assert feat_err < 0.05, feat_err
    assert mask_dis < 0.02, mask_dis

    print("KERNEL_OK")
</pallas_src>

<mosaic_0001>
module attributes {stable_mosaic.version = 11 : i64} {
  func.func @_encode_kernel(%arg0: i32, %arg1: i32, %arg2: memref<1x1x48x8xbf16, #tpu.memory_space<vmem>>, %arg3: memref<32x48xbf16, #tpu.memory_space<vmem>>, %arg4: memref<32x1xf32, #tpu.memory_space<vmem>>, %arg5: memref<4x32xf32, #tpu.memory_space<vmem>>, %arg6: memref<1x1x32x8xbf16, #tpu.memory_space<vmem>>, %arg7: memref<1x1x4x8xf32, #tpu.memory_space<vmem>>) attributes {dimension_semantics = [#tpu.dimension_semantics<parallel>, #tpu.dimension_semantics<parallel>], iteration_bounds = array<i64: 2, 8>, scalar_prefetch = 0 : i64, scratch_operands = 0 : i64, tpu.core_type = #tpu.core_type<tc>, window_params = [{transform_indices = @transform_0, window_bounds = array<i64: 1, 1, 48, 8>}, {pipeline_mode = #tpu.pipeline_mode<synchronous>, transform_indices = @transform_1, window_bounds = array<i64: 32, 48>}, {pipeline_mode = #tpu.pipeline_mode<synchronous>, transform_indices = @transform_2, window_bounds = array<i64: 32, 1>}, {pipeline_mode = #tpu.pipeline_mode<synchronous>, transform_indices = @transform_3, window_bounds = array<i64: 4, 32>}, {transform_indices = @transform_4, window_bounds = array<i64: 1, 1, 32, 8>}, {transform_indices = @transform_5, window_bounds = array<i64: 1, 1, 4, 8>}]} {
    %c0 = arith.constant 0 : index
    %c0_0 = arith.constant 0 : index
    %c0_1 = arith.constant 0 : index
    %c0_2 = arith.constant 0 : index
    %0 = vector.load %arg2[%c0, %c0_0, %c0_1, %c0_2] : memref<1x1x48x8xbf16, #tpu.memory_space<vmem>>, vector<1x1x48x8xbf16>
    %1 = vector.shape_cast %0 : vector<1x1x48x8xbf16> to vector<48x8xbf16>
    %c0_3 = arith.constant 0 : index
    %c0_4 = arith.constant 0 : index
    %2 = vector.load %arg3[%c0_3, %c0_4] : memref<32x48xbf16, #tpu.memory_space<vmem>>, vector<32x48xbf16>
    %cst = arith.constant dense<0.000000e+00> : vector<32x8xf32>
    %3 = tpu.matmul %2, %1, %cst {dimension_numbers = #tpu.dot_dimension_numbers<[1], [0], [0], [1], [0, 0, 1, 1], [], []>} : vector<32x48xbf16>, vector<48x8xbf16>, vector<32x8xf32> -> vector<32x8xf32>
    %c0_5 = arith.constant 0 : index
    %c0_6 = arith.constant 0 : index
    %4 = vector.load %arg4[%c0_5, %c0_6] : memref<32x1xf32, #tpu.memory_space<vmem>>, vector<32x1xf32>
    %5 = vector.broadcast %4 : vector<32x1xf32> to vector<32x8xf32>
    %6 = arith.addf %3, %5 : vector<32x8xf32>
    %c0_7 = arith.constant 0 : index
    %c0_8 = arith.constant 0 : index
    %7 = vector.load %arg5[%c0_7, %c0_8] : memref<4x32xf32, #tpu.memory_space<vmem>>, vector<4x32xf32>
    %cst_9 = arith.constant dense<0.000000e+00> : vector<4x8xf32>
    %8 = tpu.matmul %7, %6, %cst_9 {dimension_numbers = #tpu.dot_dimension_numbers<[1], [0], [0], [1], [0, 0, 1, 1], [], []>} : vector<4x32xf32>, vector<32x8xf32>, vector<4x8xf32> -> vector<4x8xf32>
    %9 = arith.truncf %6 : vector<32x8xf32> to vector<32x8xbf16>
    %c0_10 = arith.constant 0 : index
    %c0_11 = arith.constant 0 : index
    %c0_12 = arith.constant 0 : index
    %c0_13 = arith.constant 0 : index
    %10 = vector.load %arg6[%c0_10, %c0_11, %c0_12, %c0_13] : memref<1x1x32x8xbf16, #tpu.memory_space<vmem>>, vector<1x1x32x8xbf16>
    %11 = vector.shape_cast %10 : vector<1x1x32x8xbf16> to vector<32x8xbf16>
    %12 = vector.shape_cast %9 : vector<32x8xbf16> to vector<1x1x32x8xbf16>
    tpu.vector_store %arg6[%c0_10, %c0_11, %c0_12, %c0_13], %12 {strides = array<i32>} : memref<1x1x32x8xbf16, #tpu.memory_space<vmem>>, vector<1x1x32x8xbf16>,
    %c0_14 = arith.constant 0 : index
    %c0_15 = arith.constant 0 : index
    %c0_16 = arith.constant 0 : index
    %c0_17 = arith.constant 0 : index
    %13 = vector.load %arg7[%c0_14, %c0_15, %c0_16, %c0_17] : memref<1x1x4x8xf32, #tpu.memory_space<vmem>>, vector<1x1x4x8xf32>
    %14 = vector.shape_cast %13 : vector<1x1x4x8xf32> to vector<4x8xf32>
    %15 = vector.shape_cast %8 : vector<4x8xf32> to vector<1x1x4x8xf32>
    tpu.vector_store %arg7[%c0_14, %c0_15, %c0_16, %c0_17], %15 {strides = array<i32>} : memref<1x1x4x8xf32, #tpu.memory_space<vmem>>, vector<1x1x4x8xf32>,
    return
  }
  func.func @transform_0(%arg0: i32, %arg1: i32) -> (i32, i32, i32, i32) {
    %c0_i32 = arith.constant 0 : i32
    %c0_i32_0 = arith.constant 0 : i32
    %c0_i32_1 = arith.constant 0 : i32
    return %arg0, %arg1, %c0_i32, %c0_i32_0 : i32, i32, i32, i32
  }
  func.func @transform_1(%arg0: i32, %arg1: i32) -> (i32, i32) {
    %c0_i32 = arith.constant 0 : i32
    %c0_i32_0 = arith.constant 0 : i32
    %c0_i32_1 = arith.constant 0 : i32
    return %c0_i32, %c0_i32_0 : i32, i32
  }
  func.func @transform_2(%arg0: i32, %arg1: i32) -> (i32, i32) {
    %c0_i32 = arith.constant 0 : i32
    %c0_i32_0 = arith.constant 0 : i32
    %c0_i32_1 = arith.constant 0 : i32
    return %c0_i32, %c0_i32_0 : i32, i32
  }
  func.func @transform_3(%arg0: i32, %arg1: i32) -> (i32, i32) {
    %c0_i32 = arith.constant 0 : i32
    %c0_i32_0 = arith.constant 0 : i32
    %c0_i32_1 = arith.constant 0 : i32
    return %c0_i32, %c0_i32_0 : i32, i32
  }
  func.func @transform_4(%arg0: i32, %arg1: i32) -> (i32, i32, i32, i32) {
    %c0_i32 = arith.constant 0 : i32
    %c0_i32_0 = arith.constant 0 : i32
    %c0_i32_1 = arith.constant 0 : i32
    return %arg0, %arg1, %c0_i32, %c0_i32_0 : i32, i32, i32, i32
  }
  func.func @transform_5(%arg0: i32, %arg1: i32) -> (i32, i32, i32, i32) {
    %c0_i32 = arith.constant 0 : i32
    %c0_i32_0 = arith.constant 0 : i32
    %c0_i32_1 = arith.constant 0 : i32
    return %arg0, %arg1, %c0_i32, %c0_i32_0 : i32, i32, i32, i32
  }
}

</mosaic_0001>

<llo_original>
// kernel: tpu_custom_call.1
$region0: #{tpu_custom_call.1}
  #allocation0 [shape = 'u32[]', space=smem, size = 0x4, offset = 0x4, fixed_abs, tag = 'smem constant byte address 0x4 - core index']
  #allocation1 [shape = 'u32[144,128]{1,0:T(1,128)}', space=vmem, size = 0x12000, scoped, tag = 'internal scratch']
  %s0 = inlined_call_operand.vmem [shape: bf16[2,8,48,8], index: 0, kind: input, shape index: {}]
  %s1 = inlined_call_operand.vmem [shape: bf16[32,48], index: 1, kind: input, shape index: {}]
  %s2 = inlined_call_operand.vmem [shape: f32[32,1], index: 2, kind: input, shape index: {}]
  %s3 = inlined_call_operand.vmem [shape: f32[4,32], index: 3, kind: input, shape index: {}]
  %s4 = inlined_call_operand.vmem [shape: bf16[2,8,32,8], index: 4, kind: output, shape index: {0}]
  %s5 = inlined_call_operand.hbm [shape: f32[2,8,4,8], index: 5, kind: output, shape index: {1}]
  %6 = xla_tuple %s4, %s5
  %s7 = sld [smem:[#allocation0]]
  $region57: #{tpu_custom_call.1} parent=0
    _
  %s9 = ssub.s32 1, %s7
  %s10 = scalar_select 0, %s9, %s7
  $region1: #{tpu_custom_call.1} parent=0
    #allocation2 [shape = 'u8[4096]{0}', space=vmem, size = 0x1000, scoped, tag = 'output window, operand 1']
    #allocation3 [shape = 's32[2]{0}', space=sflag, size = 0x8, scoped, tag = 'scoped memory for tpu_custom_call.1']
    %11 = vsyncpa [#allocation3], 0
    %s12 = scalar_lea.sflag [#allocation3], 1
    %13 = vsyncpa %s12, 0
    loop: start=0, step=1, limit=18
    $region2: #{tpu_custom_call.1} parent=1 // loop_pre_header
      _
    $region3: #{tpu_custom_call.1} parent=1 // loop_header
      %s15 = sphi 0, %s19
      %p16 = scmp.ge.s32.totalorder %s15, 18
      %s22 = sphi 0, %s34
      %s23 = sphi 0, %s30
      %s24 = sphi 0, %s22
      %s25 = sphi 0, %s23
      %s26 = sphi 0, %s24
      %s27 = sphi 0, %s25
      %s39 = sphi 0, %s41
      %s42 = sphi 0, %s39
      %s43 = sphi 0, %s42
      %s59 = sphi 0, %s43
      %s63 = sphi 0, %s63
      %s65 = sphi 0, %s63
      %s66 = sphi 0, %s65
      %s80 = sphi 0, %s66
      %s84 = sphi 0, %s84
      %s86 = sphi 0, %s84
      %s87 = sphi 0, %s86
      %s101 = sphi 0, %s87
      %s105 = sphi 0, %s105
      %s107 = sphi 0, %s105
      %s108 = sphi 0, %s107
      %s122 = sphi 0, %s108
      %s130 = sphi 0, %s132
      %s133 = sphi 0, %s130
      %s134 = sphi 0, %s133
      %s150 = sphi 0, %s134
      %s158 = sphi 0, %s160
      %s161 = sphi 0, %s158
      %s162 = sphi 0, %s161
      %s178 = sphi 0, %s162
    $region4: #{tpu_custom_call.1} parent=1 // loop_header_branch
      %18 = sbr.rel (%p16) target = $region8
    $region5: #{tpu_custom_call.1} parent=1 // loop_body
      %s20 = ssub.s32 %s15, 1
      %s21 = ssub.s32 %s15, 2
      %s28 = sadd.s32 1, %s23
      %p29 = scmp.ge.s32.totalorder %s28, 8
      %s30 = scalar_select %p29, 0, %s28
      %s31 = sadd.s32 1, %s22
      %s32 = scalar_select %p29, %s31, %s22
      %p33 = scmp.ge.s32.totalorder %s32, 2
      %s34 = scalar_select %p33, 0, %s32
      %s35 = ssub.s32 %s22, %s34
      %s36 = ssub.s32 %s23, %s30
      %s37 = sor.u32 %s35, %s36
      %p38 = scmp.eq.s32.totalorder %s37, 0
      %s40 = sadd.s32 %s39, 1
      %s41 = scalar_select %p38, %s39, %s40
      %p44 = pneg %p38
      %p45 = scmp.eq.s32.totalorder %s15, 15
      %p46 = por %p44, %p45
      %p47 = scmp.ne.s32.totalorder %s39, %s42
      %p48 = scmp.eq.s32.totalorder %s15, 0
      %p49 = por %p47, %p48
      %p50 = scmp.ne.s32.totalorder %s39, %s42
      %p51 = scmp.eq.s32.totalorder %s20, 15
      %p52 = por %p50, %p51
      %p53 = scmp.ne.s32.totalorder %s42, %s43
      %p54 = scmp.eq.s32.totalorder %s20, 0
      %p55 = por %p53, %p54
      %p56 = scmp.ne.s32.totalorder %s42, %s43
      %p57 = scmp.eq.s32.totalorder %s21, 15
      %p58 = por %p56, %p57
      %p60 = scmp.ne.s32.totalorder %s43, %s59
      %p61 = scmp.eq.s32.totalorder %s21, 0
      %p62 = por %p60, %p61
      %s64 = sadd.s32 %s63, 1
      %p67 = scmp.eq.s32.totalorder %s15, 15
      %p68 = scmp.ne.s32.totalorder %s63, %s65
      %p69 = scmp.eq.s32.totalorder %s15, 0
      %p70 = por %p68, %p69
      %p71 = scmp.ne.s32.totalorder %s63, %s65
      %p72 = scmp.eq.s32.totalorder %s20, 15
      %p73 = por %p71, %p72
      %p74 = scmp.ne.s32.totalorder %s65, %s66
      %p75 = scmp.eq.s32.totalorder %s20, 0
      %p76 = por %p74, %p75
      %p77 = scmp.ne.s32.totalorder %s65, %s66
      %p78 = scmp.eq.s32.totalorder %s21, 15
      %p79 = por %p77, %p78
      %p81 = scmp.ne.s32.totalorder %s66, %s80
      %p82 = scmp.eq.s32.totalorder %s21, 0
      %p83 = por %p81, %p82
      %s85 = sadd.s32 %s84, 1
      %p88 = scmp.eq.s32.totalorder %s15, 15
      %p89 = scmp.ne.s32.totalorder %s84, %s86
      %p90 = scmp.eq.s32.totalorder %s15, 0
      %p91 = por %p89, %p90
      %p92 = scmp.ne.s32.totalorder %s84, %s86
      %p93 = scmp.eq.s32.totalorder %s20, 15
      %p94 = por %p92, %p93
      %p95 = scmp.ne.s32.totalorder %s86, %s87
      %p96 = scmp.eq.s32.totalorder %s20, 0
      %p97 = por %p95, %p96
      %p98 = scmp.ne.s32.totalorder %s86, %s87
      %p99 = scmp.eq.s32.totalorder %s21, 15
      %p100 = por %p98, %p99
      %p102 = scmp.ne.s32.totalorder %s87, %s101
      %p103 = scmp.eq.s32.totalorder %s21, 0
      %p104 = por %p102, %p103
      %s106 = sadd.s32 %s105, 1
      %p109 = scmp.eq.s32.totalorder %s15, 15
      %p110 = scmp.ne.s32.totalorder %s105, %s107
      %p111 = scmp.eq.s32.totalorder %s15, 0
      %p112 = por %p110, %p111
      %p113 = scmp.ne.s32.totalorder %s105, %s107
      %p114 = scmp.eq.s32.totalorder %s20, 15
      %p115 = por %p113, %p114
      %p116 = scmp.ne.s32.totalorder %s107, %s108
      %p117 = scmp.eq.s32.totalorder %s20, 0
      %p118 = por %p116, %p117
      %p119 = scmp.ne.s32.totalorder %s107, %s108
      %p120 = scmp.eq.s32.totalorder %s21, 15
      %p121 = por %p119, %p120
      %p123 = scmp.ne.s32.totalorder %s108, %s122
      %p124 = scmp.eq.s32.totalorder %s21, 0
      %p125 = por %p123, %p124
      %s126 = ssub.s32 %s22, %s34
      %s127 = ssub.s32 %s23, %s30
      %s128 = sor.u32 %s126, %s127
      %p129 = scmp.eq.s32.totalorder %s128, 0
      %s131 = sadd.s32 %s130, 1
      %s132 = scalar_select %p129, %s130, %s131
      %p135 = pneg %p129
      %p136 = scmp.eq.s32.totalorder %s15, 15
      %p137 = por %p135, %p136
      %p138 = scmp.ne.s32.totalorder %s130, %s133
      %p139 = scmp.eq.s32.totalorder %s15, 0
      %p140 = por %p138, %p139
      %p141 = scmp.ne.s32.totalorder %s130, %s133
      %p142 = scmp.eq.s32.totalorder %s20, 15
      %p143 = por %p141, %p142
      %p144 = scmp.ne.s32.totalorder %s133, %s134
      %p145 = scmp.eq.s32.totalorder %s20, 0
      %p146 = por %p144, %p145
      %p147 = scmp.ne.s32.totalorder %s133, %s134
      %p148 = scmp.eq.s32.totalorder %s21, 15
      %p149 = por %p147, %p148
      %p151 = scmp.ne.s32.totalorder %s134, %s150
      %p152 = scmp.eq.s32.totalorder %s21, 0
      %p153 = por %p151, %p152
      %s154 = ssub.s32 %s22, %s34
      %s155 = ssub.s32 %s23, %s30
      %s156 = sor.u32 %s154, %s155
      %p157 = scmp.eq.s32.totalorder %s156, 0
      %s159 = sadd.s32 %s158, 1
      %s160 = scalar_select %p157, %s158, %s159
      %p163 = pneg %p157
      %p164 = scmp.eq.s32.totalorder %s15, 15
      %p165 = por %p163, %p164
      %p166 = scmp.ne.s32.totalorder %s158, %s161
      %p167 = scmp.eq.s32.totalorder %s15, 0
      %p168 = por %p166, %p167
      %p169 = scmp.ne.s32.totalorder %s158, %s161
      %p170 = scmp.eq.s32.totalorder %s20, 15
      %p171 = por %p169, %p170
      %p172 = scmp.ne.s32.totalorder %s161, %s162
      %p173 = scmp.eq.s32.totalorder %s20, 0
      %p174 = por %p172, %p173
      %p175 = scmp.ne.s32.totalorder %s161, %s162
      %p176 = scmp.eq.s32.totalorder %s21, 15
      %p177 = por %p175, %p176
      %p179 = scmp.ne.s32.totalorder %s162, %s178
      %p180 = scmp.eq.s32.totalorder %s21, 0
      %p181 = por %p179, %p180
      %p182 = scmp.le.s32.totalorder 1, %s15
      %p183 = scmp.lt.s32.totalorder %s15, 17
      %p184 = pnand %p182, %p183
      %p185 = pneg %p184
      // Predicated region
      $region9: #{tpu_custom_call.1} parent=5 // pred_check
        _
      $region10: #{tpu_custom_call.1} parent=5 // pred_check_branch
        %187 = sbr.rel (%p184) target = $region12
      $region11: #{tpu_custom_call.1} parent=5 // pred_region
        %s188 = ssub.s32 %s15, 1
        // Predicated region
        $region13: #{tpu_custom_call.1} parent=11 // pred_check
          %p189 = pneg %p76
        $region14: #{tpu_custom_call.1} parent=11 // pred_check_branch
          %191 = sbr.rel (%p189) target = $region16
        $region15: #{tpu_custom_call.1} parent=11 // pred_region
          _
        $region16: #{tpu_custom_call.1} parent=11 // pred_fallthru
          _
        // Predicated region
        $region17: #{tpu_custom_call.1} parent=11 // pred_check
          %p192 = pneg %p97
        $region18: #{tpu_custom_call.1} parent=11 // pred_check_branch
          %194 = sbr.rel (%p192) target = $region20
        $region19: #{tpu_custom_call.1} parent=11 // pred_region
          _
        $region20: #{tpu_custom_call.1} parent=11 // pred_fallthru
          _
        // Predicated region
        $region21: #{tpu_custom_call.1} parent=11 // pred_check
          %p195 = pneg %p118
        $region22: #{tpu_custom_call.1} parent=11 // pred_check_branch
          %197 = sbr.rel (%p195) target = $region24
        $region23: #{tpu_custom_call.1} parent=11 // pred_region
          _
        $region24: #{tpu_custom_call.1} parent=11 // pred_fallthru
          _
      $region12: #{tpu_custom_call.1} parent=5 // pred_fallthru
        _
      %p198 = scmp.lt.s32.totalorder %s15, 16
      // Predicated region
      $region25: #{tpu_custom_call.1} parent=5 // pred_check
        %p199 = pneg %p198
      $region26: #{tpu_custom_call.1} parent=5 // pred_check_branch
        %201 = sbr.rel (%p199) target = $region28
      $region27: #{tpu_custom_call.1} parent=5 // pred_region
        // Predicated region
        $region29: #{tpu_custom_call.1} parent=27 // pred_check
          %p202 = pneg %p49
        $region30: #{tpu_custom_call.1} parent=27 // pred_check_branch
          %204 = sbr.rel (%p202) target = $region32
        $region31: #{tpu_custom_call.1} parent=27 // pred_region
          %p205 = scmp.lt.s32.totalorder %s22, 1
          %s206 = scalar_select %p205, %s22, 1
          %p207 = scmp.lt.s32.totalorder %s23, 7
          %s208 = scalar_select %p207, %s23, 7
          %s209 = smul.addr %s208, 6
          %s210 = smul.addr %s206, 48
          %s211 = sadd.s32 %s209, %s210
          %s212 = smul.addr %s211, 4
          %s213 = scalar_lea.vmem %s0, %s212
        $region32: #{tpu_custom_call.1} parent=27 // pred_fallthru
          _
      $region28: #{tpu_custom_call.1} parent=5 // pred_fallthru
        _
      %p214 = scmp.le.s32.totalorder 1, %s15
      %p215 = scmp.lt.s32.totalorder %s15, 17
      %p216 = pnand %p214, %p215
      %p217 = pneg %p216
      // Predicated region
      $region33: #{tpu_custom_call.1} parent=5 // pred_check
        _
      $region34: #{tpu_custom_call.1} parent=5 // pred_check_branch
        %219 = sbr.rel (%p216) target = $region36
      $region35: #{tpu_custom_call.1} parent=5 // pred_region
        %s220 = ssub.s32 %s15, 1
        %p221 = scmp.lt.s32.totalorder %s24, 1
        %s222 = scalar_select %p221, %s24, 1
        %p223 = scmp.lt.s32.totalorder %s25, 7
        %s224 = scalar_select %p223, %s25, 7
        %s225 = smul.addr %s224, 6
        %s226 = smul.addr %s222, 48
        %s227 = sadd.s32 %s225, %s226
        %s228 = smul.addr %s227, 4
        %s229 = scalar_lea.vmem %s0, %s228
        %p230 = pneg %p55
        %p231 = pneg %p52
        %p232 = pneg %p76
        %p233 = pneg %p73
        %p234 = pneg %p97
        %p235 = pneg %p94
        %p236 = pneg %p118
        %p237 = pneg %p115
        %p238 = pneg %p146
        %p239 = pneg %p143
        %p240 = scmp.lt.s32.totalorder %s24, 1
        %s241 = scalar_select %p240, %s24, 1
        %p242 = scmp.lt.s32.totalorder %s25, 7
        %s243 = scalar_select %p242, %s25, 7
        %s244 = smul.addr %s243, 4
        %s245 = smul.addr %s241, 32
        %s246 = sadd.s32 %s244, %s245
        %s247 = smul.addr %s246, 4
        %s248 = scalar_lea.vmem %s4, %s247
        %p249 = pneg %p174
        %p250 = pneg %p171
        %s251 = sand.u32 %s161, 1
        %s252 = scalar_lea.sflag [#allocation3], %s251
        %s253 = sand.u32 %s161, 1
        %s254 = smul.addr %s253, 4
        %s255 = scalar_lea.vmem [#allocation2], %s254
        %p256 = scmp.lt.s32.totalorder %s24, 1
        %s257 = scalar_select %p256, %s24, 1
        %p258 = scmp.lt.s32.totalorder %s25, 7
        %s259 = scalar_select %p258, %s25, 7
        %s260 = smul.addr %s259, 6
        %s261 = smul.addr %s257, 48
        %s262 = sadd.s32 %s260, %s261
        %s263 = smul.addr %s262, 4
        %s264 = scalar_lea.vmem %s0, %s263
        %p265 = scmp.lt.s32.totalorder %s24, 1
        %s266 = scalar_select %p265, %s24, 1
        %p267 = scmp.lt.s32.totalorder %s25, 7
        %s268 = scalar_select %p267, %s25, 7
        %s269 = smul.addr %s268, 4
        %s270 = smul.addr %s266, 32
        %s271 = sadd.s32 %s269, %s270
        %s272 = smul.addr %s271, 4
        %s273 = scalar_lea.vmem %s4, %s272
        %v275 = vld [vmem:[%s264] sm:$0xf]
        %v276 = vld [vmem:[%s264 + $0x4] sm:$0xf]
        %v277 = vld [vmem:[%s264 + $0x8] sm:$0xf]
        %v278 = vld [vmem:[%s264 + $0xc] sm:$0xf]
        %v279 = vld [vmem:[%s264 + $0x10] sm:$0xf]
        %v280 = vld [vmem:[%s264 + $0x14] sm:$0xf]
        %v281 = vld [vmem:[%s1] sm:$0xf]
        %v282 = vld [vmem:[%s1 + $0x4] sm:$0xf]
        %v283 = vld [vmem:[%s1 + $0x8] sm:$0xf]
        %v284 = vld [vmem:[%s1 + $0xc] sm:$0xf]
        %v285 = vld [vmem:[%s2] sm:$0xff]
        %v286 = vld [vmem:[%s2 + $0x8] sm:$0xff]
        %v287 = vld [vmem:[%s2 + $0x10] sm:$0xff]
        %v288 = vld [vmem:[%s2 + $0x18] sm:$0xff]
        %290 = vset.pattern.permute.xlu0 0
        %291 = vperm.xlu0 %290, %v285
        %v292 = vpop.permute.xlu0 %291
        %295 = vset.pattern.permute.xlu0 0
        %296 = vperm.xlu0 %295, %v286
        %v297 = vpop.permute.xlu0 %296
        %300 = vset.pattern.permute.xlu0 0
        %301 = vperm.xlu0 %300, %v287
        %v302 = vpop.permute.xlu0 %301
        %305 = vset.pattern.permute.xlu0 0
        %306 = vperm.xlu0 %305, %v288
        %v307 = vpop.permute.xlu0 %306
        %v313 = vunpack.c.l.b16 %v281
        %v314 = vunpack.c.l.b16 %v282
        %v315 = vunpack.c.l.b16 %v283
        %v316 = vunpack.c.l.b16 %v284
        %v317 = vpack.c.b16 %v314, %v313
        %v318 = vpack.c.b16 %v316, %v315
        %v325 = vunpack.c.l.b16 %v275
        %v326 = vunpack.c.l.b16 %v276
        %v327 = vunpack.c.l.b16 %v277
        %v328 = vunpack.c.l.b16 %v278
        %v329 = vunpack.c.l.b16 %v279
        %v330 = vunpack.c.l.b16 %v280
        %v331 = vpack.c.b16 %v326, %v325
        %v332 = vpack.c.b16 %v328, %v327
        %v333 = vpack.c.b16 %v330, %v329
        %vm337 = vcmask 392192
        %v339 = vsel %vm337, %v317, 0
        %v342 = vsel %vm337, %v318, 0
        %344 = vmatprep.subr.bf16.mxu0 0
        %345 = vmatpush1.bf16.msra.mxu0 %v331
        %346 = vmatprep.subr.bf16.mxu0 0
        %347 = vmatpush1.bf16.msra.mxu0 %v332
        %348 = vmatprep.subr.bf16.mxu0 0
        %349 = vmatpush1.bf16.msra.mxu0 %v333
        %350 = vmatprep.subr.bf16.mxu0 0
        %351 = vmatpush1.bf16.msra.mxu0 0
        %352 = vmatprep.subr.bf16.mxu0 0
        %353 = vmatpush1.bf16.msra.mxu0 0
        %354 = vmatprep.subr.bf16.mxu0 0
        %355 = vmatpush1.bf16.msra.mxu0 0
        %356 = vmatprep.subr.bf16.mxu0 0
        %357 = vmatpush1.bf16.msra.mxu0 0
        %358 = vmatprep.subr.bf16.mxu0 0
        %359 = vmatpush1.bf16.msra.mxu0 0
        %360 = vmatprep.subr.bf16.mxu0 0
        %361 = vmatpush1.bf16.msra.mxu0 0
        %362 = vmatprep.subr.bf16.mxu0 0
        %363 = vmatpush1.bf16.msra.mxu0 0
        %364 = vmatprep.subr.bf16.mxu0 0
        %365 = vmatpush1.bf16.msra.mxu0 0
        %366 = vmatprep.subr.bf16.mxu0 0
        %367 = vmatpush1.bf16.msra.mxu0 0
        %368 = vmatprep.subr.bf16.mxu0 0
        %369 = vmatpush1.bf16.msra.mxu0 0
        %370 = vmatprep.subr.bf16.mxu0 0
        %371 = vmatpush1.bf16.msra.mxu0 0
        %372 = vmatprep.subr.bf16.mxu0 0
        %373 = vmatpush1.bf16.msra.mxu0 0
        %374 = vmatprep.subr.bf16.mxu0 0
        %375 = vmatpush1.bf16.msra.mxu0 0
        %376 = vmatprep.mubr.bf16.mxu0 0
        %377 = vmatmul.mubr.bf16.gmra.mrb[0].mxu0 %v339
        %v378 = vpop.f32.mrb[0].mxu0
        %v379 = vadd.f32 %v292, %v378
        %v380 = vpop.f32.mrb[0].mxu0
        %v381 = vpop.f32.mrb[0].mxu0
        %v382 = vadd.f32 %v297, %v381
        %v383 = vpop.f32.mrb[0].mxu0
        %384 = vmatprep.mubr.bf16.mxu0 0
        %385 = vmatmul.mubr.bf16.gmra.mrb[0].mxu0 %v342
        %v386 = vpop.f32.mrb[0].mxu0
        %v387 = vadd.f32 %v302, %v386
        %v388 = vpop.f32.mrb[0].mxu0
        %v389 = vpop.f32.mrb[0].mxu0
        %v390 = vadd.f32 %v307, %v389
        %v391 = vpop.f32.mrb[0].mxu0
        %392 = vdwg.mxu0
        %v393 = vld [vmem:[%s3] sm:$0xf]
        %vm394 = vcmask 261120
        %v396 = vsel %vm394, %v393, 0
        %398 = vmatprep.subr.mxu0 0.0
        %399 = vmatpush1.msra.mxu0 %v379
        %400 = vmatprep.subr.mxu0 0.0
        %401 = vmatpush1.msra.mxu0 %v382
        %402 = vmatprep.subr.mxu0 0.0
        %403 = vmatpush1.msra.mxu0 %v387
        %404 = vmatprep.subr.mxu0 0.0
        %405 = vmatpush1.msra.mxu0 %v390
        %406 = vmatprep.subr.mxu0 0.0
        %407 = vmatpush1.msra.mxu0 0.0
        %408 = vmatprep.subr.mxu0 0.0
        %409 = vmatpush1.msra.mxu0 0.0
        %410 = vmatprep.subr.mxu0 0.0
        %411 = vmatpush1.msra.mxu0 0.0
        %412 = vmatprep.subr.mxu0 0.0
        %413 = vmatpush1.msra.mxu0 0.0
        %414 = vmatprep.subr.mxu0 0.0
        %415 = vmatpush1.msra.mxu0 0.0
        %416 = vmatprep.subr.mxu0 0.0
        %417 = vmatpush1.msra.mxu0 0.0
        %418 = vmatprep.subr.mxu0 0.0
        %419 = vmatpush1.msra.mxu0 0.0
        %420 = vmatprep.subr.mxu0 0.0
        %421 = vmatpush1.msra.mxu0 0.0
        %422 = vmatprep.subr.mxu0 0.0
        %423 = vmatpush1.msra.mxu0 0.0
        %424 = vmatprep.subr.mxu0 0.0
        %425 = vmatpush1.msra.mxu0 0.0
        %426 = vmatprep.subr.mxu0 0.0
        %427 = vmatpush1.msra.mxu0 0.0
        %428 = vmatprep.subr.mxu0 0.0
        %429 = vmatpush1.msra.mxu0 0.0
        %430 = vmatprep.subr.mxu0 0.0
        %431 = vmatpush1.msra.mxu0 0.0
        %432 = vmatprep.subr.mxu0 0.0
        %433 = vmatpush1.msra.mxu0 0.0
        %434 = vmatprep.subr.mxu0 0.0
        %435 = vmatpush1.msra.mxu0 0.0
        %436 = vmatprep.subr.mxu0 0.0
        %437 = vmatpush1.msra.mxu0 0.0
        %438 = vmatprep.subr.mxu0 0.0
        %439 = vmatpush1.msra.mxu0 0.0
        %440 = vmatprep.subr.mxu0 0.0
        %441 = vmatpush1.msra.mxu0 0.0
        %442 = vmatprep.subr.mxu0 0.0
        %443 = vmatpush1.msra.mxu0 0.0
        %444 = vmatprep.subr.mxu0 0.0
        %445 = vmatpush1.msra.mxu0 0.0
        %446 = vmatprep.subr.mxu0 0.0
        %447 = vmatpush1.msra.mxu0 0.0
        %448 = vmatprep.subr.mxu0 0.0
        %449 = vmatpush1.msra.mxu0 0.0
        %450 = vmatprep.subr.mxu0 0.0
        %451 = vmatpush1.msra.mxu0 0.0
        %452 = vmatprep.subr.mxu0 0.0
        %453 = vmatpush1.msra.mxu0 0.0
        %454 = vmatprep.subr.mxu0 0.0
        %455 = vmatpush1.msra.mxu0 0.0
        %456 = vmatprep.subr.mxu0 0.0
        %457 = vmatpush1.msra.mxu0 0.0
        %458 = vmatprep.subr.mxu0 0.0
        %459 = vmatpush1.msra.mxu0 0.0
        %460 = vmatprep.subr.mxu0 0.0
        %461 = vmatpush1.msra.mxu0 0.0
        %462 = vmatprep.mubr.f32.mxu0 0.0
        %463 = vmatmul.mubr.f32.gmra.mrb[0].mxu0 %v396
        %v464 = vpop.f32.mrb[0].mxu0
        %v465 = vadd.f32 0.0, %v464
        %v466 = vpop.f32.mrb[0].mxu0
        %467 = vdwg.mxu0
        %v468 = vpack.c.bf16 %v382, %v379
        %v469 = vpack.c.bf16 %v390, %v387
        %v472 = vunpack.c.l.b16 %v468
        %v473 = vunpack.c.h.b16 %v468
        %v474 = vunpack.c.l.b16 %v469
        %v475 = vunpack.c.h.b16 %v469
        %v476 = vpack.c.b16 %v472, %v472
        %v477 = vpack.c.b16 %v473, %v473
        %v478 = vpack.c.b16 %v474, %v474
        %v479 = vpack.c.b16 %v475, %v475
        %vm484 = vcmask 60416
        %485 = vst.msk [vmem:[%s273] sm:$0xf] %vm484, %v476
        %486 = vst.msk [vmem:[%s273 + $0x4] sm:$0xf] %vm484, %v477
        %487 = vst.msk [vmem:[%s273 + $0x8] sm:$0xf] %vm484, %v478
        %488 = vst.msk [vmem:[%s273 + $0xc] sm:$0xf] %vm484, %v479
        %489 = vst.msk [vmem:[%s255] sm:$0xf] %vm484, %v465
        %p490 = scmp.lt.s32.totalorder %s24, 1
        %s491 = scalar_select %p490, %s24, 1
        %p492 = scmp.lt.s32.totalorder %s25, 7
        %s493 = scalar_select %p492, %s25, 7
        %s494 = smul.addr %s493, 4
        %s495 = smul.addr %s491, 32
        %s496 = sadd.s32 %s494, %s495
        %s497 = smul.addr %s496, 4
        %s498 = scalar_lea.vmem %s4, %s497
        %s499 = sand.u32 %s161, 1
        %s500 = scalar_lea.sflag [#allocation3], %s499
        %s501 = sand.u32 %s161, 1
        %s502 = smul.addr %s501, 4
        %s503 = scalar_lea.vmem [#allocation2], %s502
        // Predicated region
        $region37: #{tpu_custom_call.1} parent=35 // pred_check
          %p504 = pneg %p143
        $region38: #{tpu_custom_call.1} parent=35 // pred_check_branch
          %506 = sbr.rel (%p504) target = $region40
        $region39: #{tpu_custom_call.1} parent=35 // pred_region
          _
        $region40: #{tpu_custom_call.1} parent=35 // pred_fallthru
          _
        // Predicated region
        $region41: #{tpu_custom_call.1} parent=35 // pred_check
          %p507 = pneg %p171
        $region42: #{tpu_custom_call.1} parent=35 // pred_check_branch
          %509 = sbr.rel (%p507) target = $region44
        $region43: #{tpu_custom_call.1} parent=35 // pred_region
          %s511 = ssub.s32 64, 64
          %512 = vsyncadd %s500, %s511
          %s513 = smul.addr %s24, 8
          %s514 = sadd.s32 %s25, %s513
          %s515 = smul.addr %s514, 64
          %s516 = scalar_lea.hbm %s5, %s515
          %s518 = sshll.u32 %s503, 4
          %s519 = int_to_ptr.vmem [resolvable:$true] %s518
          %521 = dma.vmem_to_hbm [thread:$0]  %s519, 64, %s516, %s500
        $region44: #{tpu_custom_call.1} parent=35 // pred_fallthru
          _
      $region36: #{tpu_custom_call.1} parent=5 // pred_fallthru
        _
      %p522 = scmp.le.s32.totalorder 2, %s15
      // Predicated region
      $region45: #{tpu_custom_call.1} parent=5 // pred_check
        %p523 = pneg %p522
      $region46: #{tpu_custom_call.1} parent=5 // pred_check_branch
        %525 = sbr.rel (%p523) target = $region48
      $region47: #{tpu_custom_call.1} parent=5 // pred_region
        %s526 = ssub.s32 %s15, 2
        // Predicated region
        $region49: #{tpu_custom_call.1} parent=47 // pred_check
          %p527 = pneg %p149
        $region50: #{tpu_custom_call.1} parent=47 // pred_check_branch
          %529 = sbr.rel (%p527) target = $region52
        $region51: #{tpu_custom_call.1} parent=47 // pred_region
          %p530 = scmp.lt.s32.totalorder %s26, 1
          %s531 = scalar_select %p530, %s26, 1
          %p532 = scmp.lt.s32.totalorder %s27, 7
          %s533 = scalar_select %p532, %s27, 7
          %s534 = smul.addr %s533, 4
          %s535 = smul.addr %s531, 32
          %s536 = sadd.s32 %s534, %s535
          %s537 = smul.addr %s536, 4
          %s538 = scalar_lea.vmem %s4, %s537
        $region52: #{tpu_custom_call.1} parent=47 // pred_fallthru
          _
        // Predicated region
        $region53: #{tpu_custom_call.1} parent=47 // pred_check
          %p539 = pneg %p177
        $region54: #{tpu_custom_call.1} parent=47 // pred_check_branch
          %541 = sbr.rel (%p539) target = $region56
        $region55: #{tpu_custom_call.1} parent=47 // pred_region
          %s542 = sand.u32 %s162, 1
          %s543 = scalar_lea.sflag [#allocation3], %s542
          %s544 = sand.u32 %s162, 1
          %s545 = smul.addr %s544, 4
          %s546 = scalar_lea.vmem [#allocation2], %s545
          %547 = dma.done %s543, 64
        $region56: #{tpu_custom_call.1} parent=47 // pred_fallthru
          _
      $region48: #{tpu_custom_call.1} parent=5 // pred_fallthru
        _
    $region6: #{tpu_custom_call.1} parent=1 // loop_footer
      %s19 = sadd.s32 1, %s15
    $region7: #{tpu_custom_call.1} parent=1 // loop_footer_branch
      %14 = sbr.rel target = $region3
    $region8: #{tpu_custom_call.1} parent=1 // loop_exit
      _
    %548 = vsyncpa [#allocation3], 1
    %s549 = scalar_lea.sflag [#allocation3], 1
    %550 = vsyncpa %s549, 1

</llo_original>
